<compile_context>
chip_gen: v7x
topology: tpu7x:2x2x1
jax: 0.10.0
libtpu: 0.0.40
codegen_flags: <defaults>
</compile_context>

<pallas_src>
import jax
import jax.numpy as jnp
from jax.experimental import pallas as pl
from jax.experimental.pallas import tpu as pltpu

_LANES = 128


# ----------------------------- Pallas kernel ---------------------------------
def _discriminator_kernel(x_ref, w1_ref, b1_ref, w2_ref, b2_ref,
                          wl_ref, bl_ref, o_ref):
    # backbone: Linear -> ReLU -> Linear -> ReLU (MXU matmuls, f32 accumulation)
    h = jnp.dot(x_ref[...], w1_ref[...], preferred_element_type=jnp.float32)
    h = jnp.maximum(h + b1_ref[...], 0.0)
    h = h.astype(w2_ref.dtype)                      # MXU operands in compute dtype
    f = jnp.dot(h, w2_ref[...], preferred_element_type=jnp.float32)
    f = jnp.maximum(f + b2_ref[...], 0.0)           # (tm, OP) f32

    # logic head, emitted directly in lane-dense (1, tm) form:
    #   transpose f -> (OP, tm) (standard f32 transpose, dims multiples of 128),
    #   then (8, OP) @ (OP, tm) MXU matmul; row 0 holds wl . f[t], rows 1..7 of
    #   wl are zero padding.
    fT = jnp.transpose(f)                                                  # (OP, tm)
    logit8 = jnp.dot(wl_ref[...], fT, preferred_element_type=jnp.float32)  # (8, tm)
    logit = logit8[0:1, :] + bl_ref[0, 0]                                  # (1, tm)

    # numerically-stable sigmoid via tanh (EUP); equals 1/(1+exp(-z)) exactly.
    prob = 0.5 * (jnp.tanh(0.5 * logit) + 1.0)

    # lane-dense full-width store: 4 B per batch row instead of 512 B.
    o_ref[...] = prob.astype(o_ref.dtype).reshape(o_ref.shape)


# ------------------------------- wrapper --------------------------------------
def _round_up(n, m):
    return -(-n // m) * m


def _pad2(a, shape):
    return jnp.pad(a, [(0, s - d) for s, d in zip(shape, a.shape)])


def discriminator_forward(x, params, *, block_rows=2048,
                          compute_dtype=jnp.bfloat16):
    """x: (B, in_dim) -> prob: (B, 1) float32."""
    w1, b1, w2, b2, wl, bl = params           # logical (unpadded) parameters
    B, in_dim = x.shape
    hidden = w1.shape[1]
    out_dim = w2.shape[1]
    HP = _round_up(hidden, _LANES)
    OP = _round_up(out_dim, _LANES)

    compute_dtype = jnp.dtype(x.dtype if compute_dtype is None else compute_dtype)

    # Zero-pad hidden / net_out dims to full 128-lane vregs (zeros are inert
    # through Linear+ReLU because padded biases are zero too).  Weights are a
    # few KB and stay VMEM-resident via constant index_maps.
    w1p = _pad2(w1, (in_dim, HP)).astype(compute_dtype)
    b1p = _pad2(b1.reshape(1, -1), (1, HP)).astype(jnp.float32)
    w2p = _pad2(w2, (HP, OP)).astype(compute_dtype)
    b2p = _pad2(b2.reshape(1, -1), (1, OP)).astype(jnp.float32)
    # logic weight in row 0 of an (8, OP) block -> well-shaped (8,OP)@(OP,tm) matmul
    wl8 = _pad2(wl.reshape(1, -1), (8, OP)).astype(jnp.float32)
    blp = jnp.asarray(bl, jnp.float32).reshape(1, 1)

    # TODO(synk): ideally x already arrives in compute_dtype (bf16) from its
    # producer; casting here costs one extra HBM pass over x.
    if x.dtype != compute_dtype:
        x = x.astype(compute_dtype)

    # Batch tiling: tm is a multiple of 128 (lane-dense transposed output),
    # capped so the grid has >= 2 steps when the batch allows it (megacore on
    # v7x; harmless on v5e/v6e with a single TensorCore).
    block_rows = max(_LANES, _round_up(block_rows, _LANES))
    tm = min(block_rows, max(_LANES, _round_up(-(-B // 2), _LANES)))
    Bp = _round_up(B, tm)
    if Bp != B:
        x = jnp.pad(x, ((0, Bp - B), (0, 0)))
    num_tiles = Bp // tm
    grid = (num_tiles,)

    out = pl.pallas_call(
        _discriminator_kernel,
        out_shape=jax.ShapeDtypeStruct((num_tiles, 1, tm), jnp.float32),
        grid=grid,
        in_specs=[
            pl.BlockSpec((tm, in_dim), lambda i: (i, 0)),        # x: batch-blocked
            pl.BlockSpec((in_dim, HP), lambda i: (0, 0)),        # weights: resident
            pl.BlockSpec((1, HP), lambda i: (0, 0)),
            pl.BlockSpec((HP, OP), lambda i: (0, 0)),
            pl.BlockSpec((1, OP), lambda i: (0, 0)),
            pl.BlockSpec((8, OP), lambda i: (0, 0)),
            pl.BlockSpec(memory_space=pltpu.MemorySpace.SMEM),   # scalar logic bias
        ],
        out_specs=pl.BlockSpec((1, 1, tm), lambda i: (i, 0, 0)),  # lane-dense row
        compiler_params=pltpu.CompilerParams(
            dimension_semantics=("parallel",),      # megacore sharding on v7x
            vmem_limit_bytes=32 * 1024 * 1024,      # ample headroom at tm<=2048
        ),
    )(x, w1p, b1p, w2p, b2p, wl8, blp)

    # (num_tiles, 1, tm) row-major == batch order; drop padded rows.
    return out.reshape(-1, 1)[:B]


# ------------------------- deterministic param init --------------------------
def init_params(key, in_dim, hidden, net_out_dim):
    """Mimic torch.nn.Linear default init (uniform(-1/sqrt(fan_in), ...)), then
    apply the Discriminator.__init__ scaling of the logic head."""
    def linear(key, fan_in, fan_out):
        kw, kb = jax.random.split(key)
        bound = 1.0 / jnp.sqrt(fan_in)
        w = jax.random.uniform(kw, (fan_in, fan_out), jnp.float32, -bound, bound)
        b = jax.random.uniform(kb, (1, fan_out), jnp.float32, -bound, bound)
        return w, b

    k1, k2, k3 = jax.random.split(key, 3)
    w1, b1 = linear(k1, in_dim, hidden)
    w2, b2 = linear(k2, hidden, net_out_dim)
    wl, bl = linear(k3, net_out_dim, 1)
    # self.logic.weight.data.mul_(0.1); self.logic.bias.data.mul_(0.0)
    wl = wl * 0.1
    bl = bl * 0.0
    return (w1, b1, w2, b2, wl, bl)


# pure-JAX reference for sanity checking
def reference_forward(x, params):
    w1, b1, w2, b2, wl, bl = params
    hp = jax.lax.Precision.HIGHEST
    h = jnp.maximum(jnp.dot(x, w1, precision=hp) + b1, 0.0)
    f = jnp.maximum(jnp.dot(h, w2, precision=hp) + b2, 0.0)
    return jax.nn.sigmoid(jnp.dot(f, wl, precision=hp) + bl)


if __name__ == "__main__":
    B, IN_DIM, HIDDEN, NET_OUT_DIM = 16, 32, 64, 32

    key = jax.random.PRNGKey(0)
    kx, kp = jax.random.split(key)
    x = jax.random.normal(kx, (B, IN_DIM), jnp.float32)
    params = init_params(kp, IN_DIM, HIDDEN, NET_OUT_DIM)

    ref = reference_forward(x, params)

    # f32 stream, single batch tile
    p1 = jax.block_until_ready(
        discriminator_forward(x, params, compute_dtype=jnp.float32))
    assert p1.shape == (B, 1)
    assert jnp.allclose(p1, ref, atol=1e-4, rtol=1e-4)

    # default bf16 stream (cast pushed "upstream": x handed over already in bf16)
    p2 = jax.block_until_ready(
        discriminator_forward(x.astype(jnp.bfloat16), params))
    assert p2.shape == (B, 1)
    assert jnp.allclose(p2, ref, atol=2e-2, rtol=2e-2)

    # multi-step grid (3 batch tiles of 128 rows, incl. padded batch rows)
    # exercising the pipelined / megacore-shardable path
    B2 = 300
    x2 = jax.random.normal(jax.random.PRNGKey(1), (B2, IN_DIM), jnp.float32)
    ref2 = reference_forward(x2, params)
    p3 = jax.block_until_ready(
        discriminator_forward(x2, params, block_rows=128,
                              compute_dtype=jnp.float32))
    assert p3.shape == (B2, 1)
    assert jnp.allclose(p3, ref2, atol=1e-4, rtol=1e-4)

    print("KERNEL_OK")
</pallas_src>

<mosaic_0001>
module attributes {stable_mosaic.version = 11 : i64} {
  func.func @_discriminator_kernel(%arg0: i32, %arg1: memref<128x32xf32, #tpu.memory_space<vmem>>, %arg2: memref<32x128xf32, #tpu.memory_space<vmem>>, %arg3: memref<1x128xf32, #tpu.memory_space<vmem>>, %arg4: memref<128x128xf32, #tpu.memory_space<vmem>>, %arg5: memref<1x128xf32, #tpu.memory_space<vmem>>, %arg6: memref<8x128xf32, #tpu.memory_space<vmem>>, %arg7: memref<1x1xf32, #tpu.memory_space<smem>>, %arg8: memref<1x1x128xf32, #tpu.memory_space<vmem>>) attributes {dimension_semantics = [#tpu.dimension_semantics<parallel>], iteration_bounds = array<i64: 1>, scalar_prefetch = 0 : i64, scratch_operands = 0 : i64, tpu.core_type = #tpu.core_type<tc>, window_params = [{transform_indices = @transform_0, window_bounds = array<i64: 128, 32>}, {pipeline_mode = #tpu.pipeline_mode<synchronous>, transform_indices = @transform_1, window_bounds = array<i64: 32, 128>}, {pipeline_mode = #tpu.pipeline_mode<synchronous>, transform_indices = @transform_2, window_bounds = array<i64: 1, 128>}, {pipeline_mode = #tpu.pipeline_mode<synchronous>, transform_indices = @transform_3, window_bounds = array<i64: 128, 128>}, {pipeline_mode = #tpu.pipeline_mode<synchronous>, transform_indices = @transform_4, window_bounds = array<i64: 1, 128>}, {pipeline_mode = #tpu.pipeline_mode<synchronous>, transform_indices = @transform_5, window_bounds = array<i64: 8, 128>}, {transform_indices = @transform_6, window_bounds = array<i64: 1, 1>}, {transform_indices = @transform_7, window_bounds = array<i64: 1, 1, 128>}]} {
    %c0 = arith.constant 0 : index
    %c0_0 = arith.constant 0 : index
    %0 = vector.load %arg1[%c0, %c0_0] : memref<128x32xf32, #tpu.memory_space<vmem>>, vector<128x32xf32>
    %c0_1 = arith.constant 0 : index
    %c0_2 = arith.constant 0 : index
    %1 = vector.load %arg2[%c0_1, %c0_2] : memref<32x128xf32, #tpu.memory_space<vmem>>, vector<32x128xf32>
    %cst = arith.constant dense<0.000000e+00> : vector<128x128xf32>
    %2 = tpu.matmul %0, %1, %cst {dimension_numbers = #tpu.dot_dimension_numbers<[1], [0], [0], [1], [0, 0, 1, 1], [], []>} : vector<128x32xf32>, vector<32x128xf32>, vector<128x128xf32> -> vector<128x128xf32>
    %c0_3 = arith.constant 0 : index
    %c0_4 = arith.constant 0 : index
    %3 = vector.load %arg3[%c0_3, %c0_4] : memref<1x128xf32, #tpu.memory_space<vmem>>, vector<1x128xf32>
    %4 = vector.broadcast %3 : vector<1x128xf32> to vector<128x128xf32>
    %5 = arith.addf %2, %4 : vector<128x128xf32>
    %cst_5 = arith.constant 0.000000e+00 : f32
    %6 = vector.broadcast %cst_5 : f32 to vector<128x128xf32>
    %7 = arith.maximumf %5, %6 : vector<128x128xf32>
    %c0_6 = arith.constant 0 : index
    %c0_7 = arith.constant 0 : index
    %8 = vector.load %arg4[%c0_6, %c0_7] : memref<128x128xf32, #tpu.memory_space<vmem>>, vector<128x128xf32>
    %cst_8 = arith.constant dense<0.000000e+00> : vector<128x128xf32>
    %9 = tpu.matmul %7, %8, %cst_8 {dimension_numbers = #tpu.dot_dimension_numbers<[1], [0], [0], [1], [0, 0, 1, 1], [], []>} : vector<128x128xf32>, vector<128x128xf32>, vector<128x128xf32> -> vector<128x128xf32>
    %c0_9 = arith.constant 0 : index
    %c0_10 = arith.constant 0 : index
    %10 = vector.load %arg5[%c0_9, %c0_10] : memref<1x128xf32, #tpu.memory_space<vmem>>, vector<1x128xf32>
    %11 = vector.broadcast %10 : vector<1x128xf32> to vector<128x128xf32>
    %12 = arith.addf %9, %11 : vector<128x128xf32>
    %cst_11 = arith.constant 0.000000e+00 : f32
    %13 = vector.broadcast %cst_11 : f32 to vector<128x128xf32>
    %14 = arith.maximumf %12, %13 : vector<128x128xf32>
    %15 = tpu.transpose %14, [1, 0] : vector<128x128xf32> -> vector<128x128xf32>
    %c0_12 = arith.constant 0 : index
    %c0_13 = arith.constant 0 : index
    %16 = vector.load %arg6[%c0_12, %c0_13] : memref<8x128xf32, #tpu.memory_space<vmem>>, vector<8x128xf32>
    %cst_14 = arith.constant dense<0.000000e+00> : vector<8x128xf32>
    %17 = tpu.matmul %16, %15, %cst_14 {dimension_numbers = #tpu.dot_dimension_numbers<[1], [0], [0], [1], [0, 0, 1, 1], [], []>} : vector<8x128xf32>, vector<128x128xf32>, vector<8x128xf32> -> vector<8x128xf32>
    %18 = vector.extract_strided_slice %17 {offsets = [0, 0], sizes = [1, 128], strides = [1, 1]} : vector<8x128xf32> to vector<1x128xf32>
    %c0_15 = arith.constant 0 : index
    %c0_16 = arith.constant 0 : index
    %19 = memref.load %arg7[%c0_15, %c0_16] : memref<1x1xf32, #tpu.memory_space<smem>>
    %20 = vector.broadcast %19 : f32 to vector<1x128xf32>
    %21 = arith.addf %18, %20 : vector<1x128xf32>
    %cst_17 = arith.constant 5.000000e-01 : f32
    %22 = vector.broadcast %cst_17 : f32 to vector<1x128xf32>
    %23 = arith.mulf %22, %21 : vector<1x128xf32>
    %24 = math.tanh %23 : vector<1x128xf32>
    %cst_18 = arith.constant 1.000000e+00 : f32
    %25 = vector.broadcast %cst_18 : f32 to vector<1x128xf32>
    %26 = arith.addf %24, %25 : vector<1x128xf32>
    %cst_19 = arith.constant 5.000000e-01 : f32
    %27 = vector.broadcast %cst_19 : f32 to vector<1x128xf32>
    %28 = arith.mulf %27, %26 : vector<1x128xf32>
    %29 = vector.shape_cast %28 : vector<1x128xf32> to vector<1x1x128xf32>
    %c0_20 = arith.constant 0 : index
    %c0_21 = arith.constant 0 : index
    %c0_22 = arith.constant 0 : index
    %30 = vector.load %arg8[%c0_20, %c0_21, %c0_22] : memref<1x1x128xf32, #tpu.memory_space<vmem>>, vector<1x1x128xf32>
    tpu.vector_store %arg8[%c0_20, %c0_21, %c0_22], %29 {strides = array<i32>} : memref<1x1x128xf32, #tpu.memory_space<vmem>>, vector<1x1x128xf32>,
    return
  }
  func.func @transform_0(%arg0: i32) -> (i32, i32) {
    %c0_i32 = arith.constant 0 : i32
    %c0_i32_0 = arith.constant 0 : i32
    return %arg0, %c0_i32 : i32, i32
  }
  func.func @transform_1(%arg0: i32) -> (i32, i32) {
    %c0_i32 = arith.constant 0 : i32
    %c0_i32_0 = arith.constant 0 : i32
    %c0_i32_1 = arith.constant 0 : i32
    return %c0_i32, %c0_i32_0 : i32, i32
  }
  func.func @transform_2(%arg0: i32) -> (i32, i32) {
    %c0_i32 = arith.constant 0 : i32
    %c0_i32_0 = arith.constant 0 : i32
    %c0_i32_1 = arith.constant 0 : i32
    return %c0_i32, %c0_i32_0 : i32, i32
  }
  func.func @transform_3(%arg0: i32) -> (i32, i32) {
    %c0_i32 = arith.constant 0 : i32
    %c0_i32_0 = arith.constant 0 : i32
    %c0_i32_1 = arith.constant 0 : i32
    return %c0_i32, %c0_i32_0 : i32, i32
  }
  func.func @transform_4(%arg0: i32) -> (i32, i32) {
    %c0_i32 = arith.constant 0 : i32
    %c0_i32_0 = arith.constant 0 : i32
    %c0_i32_1 = arith.constant 0 : i32
    return %c0_i32, %c0_i32_0 : i32, i32
  }
  func.func @transform_5(%arg0: i32) -> (i32, i32) {
    %c0_i32 = arith.constant 0 : i32
    %c0_i32_0 = arith.constant 0 : i32
    %c0_i32_1 = arith.constant 0 : i32
    return %c0_i32, %c0_i32_0 : i32, i32
  }
  func.func @transform_6(%arg0: i32) -> (i32, i32) {
    %c0_i32 = arith.constant 0 : i32
    %c0_i32_0 = arith.constant 0 : i32
    %c0_i32_1 = arith.constant 0 : i32
    return %c0_i32, %c0_i32_0 : i32, i32
  }
  func.func @transform_7(%arg0: i32) -> (i32, i32, i32) {
    %c0_i32 = arith.constant 0 : i32
    %c0_i32_0 = arith.constant 0 : i32
    %c0_i32_1 = arith.constant 0 : i32
    return %arg0, %c0_i32, %c0_i32_0 : i32, i32, i32
  }
}

</mosaic_0001>

<llo_original>
// kernel: tpu_custom_call.1
$region0: #{tpu_custom_call.1}
  #allocation0 [shape = 'u32[]', space=smem, size = 0x4, offset = 0x4, fixed_abs, tag = 'smem constant byte address 0x4 - core index']
  #allocation1 [shape = 'u32[144,128]{1,0:T(1,128)}', space=vmem, size = 0x12000, scoped, tag = 'internal scratch']
  #allocation2 [shape = 'f32[1,1]{1,0:T(1,128)S(6)}', space=smem, size = 0x200, scoped, tag = 'scoped memory for tpu_custom_call.1']
  %s0 = inlined_call_operand.vmem [shape: f32[128,32], index: 0, kind: input, shape index: {}]
  %s1 = inlined_call_operand.vmem [shape: f32[32,128], index: 1, kind: input, shape index: {}]
  %s2 = inlined_call_operand.vmem [shape: f32[1,128], index: 2, kind: input, shape index: {}]
  %s3 = inlined_call_operand.vmem [shape: f32[128,128], index: 3, kind: input, shape index: {}]
  %s4 = inlined_call_operand.vmem [shape: f32[1,128], index: 4, kind: input, shape index: {}]
  %s5 = inlined_call_operand.vmem [shape: f32[8,128], index: 5, kind: input, shape index: {}]
  %s6 = inlined_call_operand.<no memory space> [shape: f32[1,1], index: 6, kind: input, shape index: {}]
  %s7 = inlined_call_operand.hbm [shape: f32[1,1,128], index: 7, kind: output, shape index: {}]
  %s8 = sld [smem:[#allocation0]]
  $region38: #{tpu_custom_call.1} parent=0
    _
  %s10 = ssub.s32 1, %s8
  %s11 = scalar_select 0, %s10, %s8
  %12 = sst [smem:[#allocation2]] %s6
  $region1: #{tpu_custom_call.1} parent=0
    #allocation3 [shape = 'u8[512]{0}', space=vmem, size = 0x400, scoped, tag = 'output window, operand 0, single buffered']
    #allocation4 [shape = 's32[1]{0}', space=sflag, size = 0x4, scoped, tag = 'scoped memory for tpu_custom_call.1']
    %13 = vsyncpa [#allocation4], 0
    // Predicated region
    $region2: #{tpu_custom_call.1} parent=1 // pred_check
      _
    $region3: #{tpu_custom_call.1} parent=1 // pred_check_branch
      %15 = sbr.rel (0) target = $region5
    $region4: #{tpu_custom_call.1} parent=1 // pred_region
      _
    $region5: #{tpu_custom_call.1} parent=1 // pred_fallthru
      _
    // Predicated region
    $region6: #{tpu_custom_call.1} parent=1 // pred_check
      _
    $region7: #{tpu_custom_call.1} parent=1 // pred_check_branch
      %17 = sbr.rel (0) target = $region9
    $region8: #{tpu_custom_call.1} parent=1 // pred_region
      _
    $region9: #{tpu_custom_call.1} parent=1 // pred_fallthru
      _
    // Predicated region
    $region10: #{tpu_custom_call.1} parent=1 // pred_check
      _
    $region11: #{tpu_custom_call.1} parent=1 // pred_check_branch
      %19 = sbr.rel (0) target = $region13
    $region12: #{tpu_custom_call.1} parent=1 // pred_region
      _
    $region13: #{tpu_custom_call.1} parent=1 // pred_fallthru
      _
    // Predicated region
    $region14: #{tpu_custom_call.1} parent=1 // pred_check
      _
    $region15: #{tpu_custom_call.1} parent=1 // pred_check_branch
      %21 = sbr.rel (0) target = $region17
    $region16: #{tpu_custom_call.1} parent=1 // pred_region
      _
    $region17: #{tpu_custom_call.1} parent=1 // pred_fallthru
      _
    // Predicated region
    $region18: #{tpu_custom_call.1} parent=1 // pred_check
      _
    $region19: #{tpu_custom_call.1} parent=1 // pred_check_branch
      %23 = sbr.rel (0) target = $region21
    $region20: #{tpu_custom_call.1} parent=1 // pred_region
      _
    $region21: #{tpu_custom_call.1} parent=1 // pred_fallthru
      _
    // Predicated region
    $region22: #{tpu_custom_call.1} parent=1 // pred_check
      _
    $region23: #{tpu_custom_call.1} parent=1 // pred_check_branch
      %25 = sbr.rel (0) target = $region25
    $region24: #{tpu_custom_call.1} parent=1 // pred_region
      _
    $region25: #{tpu_custom_call.1} parent=1 // pred_fallthru
      _
    // Predicated region
    $region26: #{tpu_custom_call.1} parent=1 // pred_check
      _
    $region27: #{tpu_custom_call.1} parent=1 // pred_check_branch
      %27 = sbr.rel (0) target = $region29
    $region28: #{tpu_custom_call.1} parent=1 // pred_region
      _
    $region29: #{tpu_custom_call.1} parent=1 // pred_fallthru
      _
    %v28 = vld [vmem:[%s0] sm:$0xff]
    %v29 = vld [vmem:[%s0 + $0x8] sm:$0xff]
    %v30 = vld [vmem:[%s0 + $0x10] sm:$0xff]
    %v31 = vld [vmem:[%s0 + $0x18] sm:$0xff]
    %v32 = vld [vmem:[%s0 + $0x20] sm:$0xff]
    %v33 = vld [vmem:[%s0 + $0x28] sm:$0xff]
    %v34 = vld [vmem:[%s0 + $0x30] sm:$0xff]
    %v35 = vld [vmem:[%s0 + $0x38] sm:$0xff]
    %v36 = vld [vmem:[%s0 + $0x40] sm:$0xff]
    %v37 = vld [vmem:[%s0 + $0x48] sm:$0xff]
    %v38 = vld [vmem:[%s0 + $0x50] sm:$0xff]
    %v39 = vld [vmem:[%s0 + $0x58] sm:$0xff]
    %v40 = vld [vmem:[%s0 + $0x60] sm:$0xff]
    %v41 = vld [vmem:[%s0 + $0x68] sm:$0xff]
    %v42 = vld [vmem:[%s0 + $0x70] sm:$0xff]
    %v43 = vld [vmem:[%s0 + $0x78] sm:$0xff]
    %v44 = vld [vmem:[%s1] sm:$0xff]
    %v45 = vld [vmem:[%s1 + $0x8] sm:$0xff]
    %v46 = vld [vmem:[%s1 + $0x10] sm:$0xff]
    %v47 = vld [vmem:[%s1 + $0x18] sm:$0xff]
    %v48 = vld [vmem:[%s2] sm:$0x1]
    %v50 = vlaneseq
    %v51 = vshrl.u32 %v50, 7
    %v52 = vsub.s32 0, %v51
    %v53 = vrot.slane %v48, %v52
    %vm55 = vcmask 261120
    %v57 = vsel %vm55, %v28, 0
    %v60 = vsel %vm55, %v29, 0
    %v63 = vsel %vm55, %v30, 0
    %v66 = vsel %vm55, %v31, 0
    %v69 = vsel %vm55, %v32, 0
    %v72 = vsel %vm55, %v33, 0
    %v75 = vsel %vm55, %v34, 0
    %v78 = vsel %vm55, %v35, 0
    %v81 = vsel %vm55, %v36, 0
    %v84 = vsel %vm55, %v37, 0
    %v87 = vsel %vm55, %v38, 0
    %v90 = vsel %vm55, %v39, 0
    %v93 = vsel %vm55, %v40, 0
    %v96 = vsel %vm55, %v41, 0
    %v99 = vsel %vm55, %v42, 0
    %v102 = vsel %vm55, %v43, 0
    %104 = vmatprep.subr.mxu0 0.0
    %105 = vmatpush1.msra.mxu0 %v44
    %106 = vmatprep.subr.mxu0 0.0
    %107 = vmatpush1.msra.mxu0 %v45
    %108 = vmatprep.subr.mxu0 0.0
    %109 = vmatpush1.msra.mxu0 %v46
    %110 = vmatprep.subr.mxu0 0.0
    %111 = vmatpush1.msra.mxu0 %v47
    %112 = vmatprep.subr.mxu0 0.0
    %113 = vmatpush1.msra.mxu0 0.0
    %114 = vmatprep.subr.mxu0 0.0
    %115 = vmatpush1.msra.mxu0 0.0
    %116 = vmatprep.subr.mxu0 0.0
    %117 = vmatpush1.msra.mxu0 0.0
    %118 = vmatprep.subr.mxu0 0.0
    %119 = vmatpush1.msra.mxu0 0.0
    %120 = vmatprep.subr.mxu0 0.0
    %121 = vmatpush1.msra.mxu0 0.0
    %122 = vmatprep.subr.mxu0 0.0
    %123 = vmatpush1.msra.mxu0 0.0
    %124 = vmatprep.subr.mxu0 0.0
    %125 = vmatpush1.msra.mxu0 0.0
    %126 = vmatprep.subr.mxu0 0.0
    %127 = vmatpush1.msra.mxu0 0.0
    %128 = vmatprep.subr.mxu0 0.0
    %129 = vmatpush1.msra.mxu0 0.0
    %130 = vmatprep.subr.mxu0 0.0
    %131 = vmatpush1.msra.mxu0 0.0
    %132 = vmatprep.subr.mxu0 0.0
    %133 = vmatpush1.msra.mxu0 0.0
    %134 = vmatprep.subr.mxu0 0.0
    %135 = vmatpush1.msra.mxu0 0.0
    %136 = vmatprep.subr.mxu0 0.0
    %137 = vmatpush1.msra.mxu0 0.0
    %138 = vmatprep.subr.mxu0 0.0
    %139 = vmatpush1.msra.mxu0 0.0
    %140 = vmatprep.subr.mxu0 0.0
    %141 = vmatpush1.msra.mxu0 0.0
    %142 = vmatprep.subr.mxu0 0.0
    %143 = vmatpush1.msra.mxu0 0.0
    %144 = vmatprep.subr.mxu0 0.0
    %145 = vmatpush1.msra.mxu0 0.0
    %146 = vmatprep.subr.mxu0 0.0
    %147 = vmatpush1.msra.mxu0 0.0
    %148 = vmatprep.subr.mxu0 0.0
    %149 = vmatpush1.msra.mxu0 0.0
    %150 = vmatprep.subr.mxu0 0.0
    %151 = vmatpush1.msra.mxu0 0.0
    %152 = vmatprep.subr.mxu0 0.0
    %153 = vmatpush1.msra.mxu0 0.0
    %154 = vmatprep.subr.mxu0 0.0
    %155 = vmatpush1.msra.mxu0 0.0
    %156 = vmatprep.subr.mxu0 0.0
    %157 = vmatpush1.msra.mxu0 0.0
    %158 = vmatprep.subr.mxu0 0.0
    %159 = vmatpush1.msra.mxu0 0.0
    %160 = vmatprep.subr.mxu0 0.0
    %161 = vmatpush1.msra.mxu0 0.0
    %162 = vmatprep.subr.mxu0 0.0
    %163 = vmatpush1.msra.mxu0 0.0
    %164 = vmatprep.subr.mxu0 0.0
    %165 = vmatpush1.msra.mxu0 0.0
    %166 = vmatprep.subr.mxu0 0.0
    %167 = vmatpush1.msra.mxu0 0.0
    %168 = vmatprep.mubr.f32.mxu0 0.0
    %169 = vmatmul.mubr.f32.gmra.mrb[0].mxu0 %v57
    %v170 = vpop.f32.mrb[0].mxu0
    %v171 = vadd.f32 %v53, %v170
    %v172 = vpop.f32.mrb[0].mxu0
    %173 = vmatprep.mubr.f32.mxu0 0.0
    %174 = vmatmul.mubr.f32.gmra.mrb[0].mxu0 %v60
    %v175 = vpop.f32.mrb[0].mxu0
    %v176 = vadd.f32 %v53, %v175
    %v177 = vpop.f32.mrb[0].mxu0
    %178 = vmatprep.mubr.f32.mxu0 0.0
    %179 = vmatmul.mubr.f32.gmra.mrb[0].mxu0 %v63
    %v180 = vpop.f32.mrb[0].mxu0
    %v181 = vadd.f32 %v53, %v180
    %v182 = vpop.f32.mrb[0].mxu0
    %183 = vmatprep.mubr.f32.mxu0 0.0
    %184 = vmatmul.mubr.f32.gmra.mrb[0].mxu0 %v66
    %v185 = vpop.f32.mrb[0].mxu0
    %v186 = vadd.f32 %v53, %v185
    %v187 = vpop.f32.mrb[0].mxu0
    %188 = vmatprep.mubr.f32.mxu0 0.0
    %189 = vmatmul.mubr.f32.gmra.mrb[0].mxu0 %v69
    %v190 = vpop.f32.mrb[0].mxu0
    %v191 = vadd.f32 %v53, %v190
    %v192 = vpop.f32.mrb[0].mxu0
    %193 = vmatprep.mubr.f32.mxu0 0.0
    %194 = vmatmul.mubr.f32.gmra.mrb[0].mxu0 %v72
    %v195 = vpop.f32.mrb[0].mxu0
    %v196 = vadd.f32 %v53, %v195
    %v197 = vpop.f32.mrb[0].mxu0
    %198 = vmatprep.mubr.f32.mxu0 0.0
    %199 = vmatmul.mubr.f32.gmra.mrb[0].mxu0 %v75
    %v200 = vpop.f32.mrb[0].mxu0
    %v201 = vadd.f32 %v53, %v200
    %v202 = vpop.f32.mrb[0].mxu0
    %203 = vmatprep.mubr.f32.mxu0 0.0
    %204 = vmatmul.mubr.f32.gmra.mrb[0].mxu0 %v78
    %v205 = vpop.f32.mrb[0].mxu0
    %v206 = vadd.f32 %v53, %v205
    %v207 = vpop.f32.mrb[0].mxu0
    %208 = vmatprep.mubr.f32.mxu0 0.0
    %209 = vmatmul.mubr.f32.gmra.mrb[0].mxu0 %v81
    %v210 = vpop.f32.mrb[0].mxu0
    %v211 = vadd.f32 %v53, %v210
    %v212 = vpop.f32.mrb[0].mxu0
    %213 = vmatprep.mubr.f32.mxu0 0.0
    %214 = vmatmul.mubr.f32.gmra.mrb[0].mxu0 %v84
    %v215 = vpop.f32.mrb[0].mxu0
    %v216 = vadd.f32 %v53, %v215
    %v217 = vpop.f32.mrb[0].mxu0
    %218 = vmatprep.mubr.f32.mxu0 0.0
    %219 = vmatmul.mubr.f32.gmra.mrb[0].mxu0 %v87
    %v220 = vpop.f32.mrb[0].mxu0
    %v221 = vadd.f32 %v53, %v220
    %v222 = vpop.f32.mrb[0].mxu0
    %223 = vmatprep.mubr.f32.mxu0 0.0
    %224 = vmatmul.mubr.f32.gmra.mrb[0].mxu0 %v90
    %v225 = vpop.f32.mrb[0].mxu0
    %v226 = vadd.f32 %v53, %v225
    %v227 = vpop.f32.mrb[0].mxu0
    %228 = vmatprep.mubr.f32.mxu0 0.0
    %229 = vmatmul.mubr.f32.gmra.mrb[0].mxu0 %v93
    %v230 = vpop.f32.mrb[0].mxu0
    %v231 = vadd.f32 %v53, %v230
    %v232 = vpop.f32.mrb[0].mxu0
    %233 = vmatprep.mubr.f32.mxu0 0.0
    %234 = vmatmul.mubr.f32.gmra.mrb[0].mxu0 %v96
    %v235 = vpop.f32.mrb[0].mxu0
    %v236 = vadd.f32 %v53, %v235
    %v237 = vpop.f32.mrb[0].mxu0
    %238 = vmatprep.mubr.f32.mxu0 0.0
    %239 = vmatmul.mubr.f32.gmra.mrb[0].mxu0 %v99
    %v240 = vpop.f32.mrb[0].mxu0
    %v241 = vadd.f32 %v53, %v240
    %v242 = vpop.f32.mrb[0].mxu0
    %243 = vmatprep.mubr.f32.mxu0 0.0
    %244 = vmatmul.mubr.f32.gmra.mrb[0].mxu0 %v102
    %v245 = vpop.f32.mrb[0].mxu0
    %v246 = vadd.f32 %v53, %v245
    %v247 = vpop.f32.mrb[0].mxu0
    %248 = vdwg.mxu0
    %v249 = vmax.f32 %v171, 0.0
    %v250 = vmax.f32 %v176, 0.0
    %v251 = vmax.f32 %v181, 0.0
    %v252 = vmax.f32 %v186, 0.0
    %v253 = vmax.f32 %v191, 0.0
    %v254 = vmax.f32 %v196, 0.0
    %v255 = vmax.f32 %v201, 0.0
    %v256 = vmax.f32 %v206, 0.0
    %v257 = vmax.f32 %v211, 0.0
    %v258 = vmax.f32 %v216, 0.0
    %v259 = vmax.f32 %v221, 0.0
    %v260 = vmax.f32 %v226, 0.0
    %v261 = vmax.f32 %v231, 0.0
    %v262 = vmax.f32 %v236, 0.0
    %v263 = vmax.f32 %v241, 0.0
    %v264 = vmax.f32 %v246, 0.0
    %v265 = vld [vmem:[%s3] sm:$0xff]
    %v266 = vld [vmem:[%s3 + $0x8] sm:$0xff]
    %v267 = vld [vmem:[%s3 + $0x10] sm:$0xff]
    %v268 = vld [vmem:[%s3 + $0x18] sm:$0xff]
    %v269 = vld [vmem:[%s3 + $0x20] sm:$0xff]
    %v270 = vld [vmem:[%s3 + $0x28] sm:$0xff]
    %v271 = vld [vmem:[%s3 + $0x30] sm:$0xff]
    %v272 = vld [vmem:[%s3 + $0x38] sm:$0xff]
    %v273 = vld [vmem:[%s3 + $0x40] sm:$0xff]
    %v274 = vld [vmem:[%s3 + $0x48] sm:$0xff]
    %v275 = vld [vmem:[%s3 + $0x50] sm:$0xff]
    %v276 = vld [vmem:[%s3 + $0x58] sm:$0xff]
    %v277 = vld [vmem:[%s3 + $0x60] sm:$0xff]
    %v278 = vld [vmem:[%s3 + $0x68] sm:$0xff]
    %v279 = vld [vmem:[%s3 + $0x70] sm:$0xff]
    %v280 = vld [vmem:[%s3 + $0x78] sm:$0xff]
    %v281 = vld [vmem:[%s4] sm:$0x1]
    %v283 = vlaneseq
    %v284 = vshrl.u32 %v283, 7
    %v285 = vsub.s32 0, %v284
    %v286 = vrot.slane %v281, %v285
    %288 = vmatprep.subr.mxu0 0.0
    %289 = vmatpush1.msra.mxu0 %v265
    %290 = vmatprep.subr.mxu0 0.0
    %291 = vmatpush1.msra.mxu0 %v266
    %292 = vmatprep.subr.mxu0 0.0
    %293 = vmatpush1.msra.mxu0 %v267
    %294 = vmatprep.subr.mxu0 0.0
    %295 = vmatpush1.msra.mxu0 %v268
    %296 = vmatprep.subr.mxu0 0.0
    %297 = vmatpush1.msra.mxu0 %v269
    %298 = vmatprep.subr.mxu0 0.0
    %299 = vmatpush1.msra.mxu0 %v270
    %300 = vmatprep.subr.mxu0 0.0
    %301 = vmatpush1.msra.mxu0 %v271
    %302 = vmatprep.subr.mxu0 0.0
    %303 = vmatpush1.msra.mxu0 %v272
    %304 = vmatprep.subr.mxu0 0.0
    %305 = vmatpush1.msra.mxu0 %v273
    %306 = vmatprep.subr.mxu0 0.0
    %307 = vmatpush1.msra.mxu0 %v274
    %308 = vmatprep.subr.mxu0 0.0
    %309 = vmatpush1.msra.mxu0 %v275
    %310 = vmatprep.subr.mxu0 0.0
    %311 = vmatpush1.msra.mxu0 %v276
    %312 = vmatprep.subr.mxu0 0.0
    %313 = vmatpush1.msra.mxu0 %v277
    %314 = vmatprep.subr.mxu0 0.0
    %315 = vmatpush1.msra.mxu0 %v278
    %316 = vmatprep.subr.mxu0 0.0
    %317 = vmatpush1.msra.mxu0 %v279
    %318 = vmatprep.subr.mxu0 0.0
    %319 = vmatpush1.msra.mxu0 %v280
    %320 = vmatprep.subr.mxu0 0.0
    %321 = vmatpush1.msra.mxu0 0.0
    %322 = vmatprep.subr.mxu0 0.0
    %323 = vmatpush1.msra.mxu0 0.0
    %324 = vmatprep.subr.mxu0 0.0
    %325 = vmatpush1.msra.mxu0 0.0
    %326 = vmatprep.subr.mxu0 0.0
    %327 = vmatpush1.msra.mxu0 0.0
    %328 = vmatprep.subr.mxu0 0.0
    %329 = vmatpush1.msra.mxu0 0.0
    %330 = vmatprep.subr.mxu0 0.0
    %331 = vmatpush1.msra.mxu0 0.0
    %332 = vmatprep.subr.mxu0 0.0
    %333 = vmatpush1.msra.mxu0 0.0
    %334 = vmatprep.subr.mxu0 0.0
    %335 = vmatpush1.msra.mxu0 0.0
    %336 = vmatprep.subr.mxu0 0.0
    %337 = vmatpush1.msra.mxu0 0.0
    %338 = vmatprep.subr.mxu0 0.0
    %339 = vmatpush1.msra.mxu0 0.0
    %340 = vmatprep.subr.mxu0 0.0
    %341 = vmatpush1.msra.mxu0 0.0
    %342 = vmatprep.subr.mxu0 0.0
    %343 = vmatpush1.msra.mxu0 0.0
    %344 = vmatprep.subr.mxu0 0.0
    %345 = vmatpush1.msra.mxu0 0.0
    %346 = vmatprep.subr.mxu0 0.0
    %347 = vmatpush1.msra.mxu0 0.0
    %348 = vmatprep.subr.mxu0 0.0
    %349 = vmatpush1.msra.mxu0 0.0
    %350 = vmatprep.subr.mxu0 0.0
    %351 = vmatpush1.msra.mxu0 0.0
    %352 = vmatprep.mubr.f32.mxu0 0.0
    %353 = vmatmul.mubr.f32.gmra.mrb[0].mxu0 %v249
    %v354 = vpop.f32.mrb[0].mxu0
    %v355 = vadd.f32 %v286, %v354
    %v356 = vpop.f32.mrb[0].mxu0
    %357 = vmatprep.mubr.f32.mxu0 0.0
    %358 = vmatmul.mubr.f32.gmra.mrb[0].mxu0 %v250
    %v359 = vpop.f32.mrb[0].mxu0
    %v360 = vadd.f32 %v286, %v359
    %v361 = vpop.f32.mrb[0].mxu0
    %362 = vmatprep.mubr.f32.mxu0 0.0
    %363 = vmatmul.mubr.f32.gmra.mrb[0].mxu0 %v251
    %v364 = vpop.f32.mrb[0].mxu0
    %v365 = vadd.f32 %v286, %v364
    %v366 = vpop.f32.mrb[0].mxu0
    %367 = vmatprep.mubr.f32.mxu0 0.0
    %368 = vmatmul.mubr.f32.gmra.mrb[0].mxu0 %v252
    %v369 = vpop.f32.mrb[0].mxu0
    %v370 = vadd.f32 %v286, %v369
    %v371 = vpop.f32.mrb[0].mxu0
    %372 = vmatprep.mubr.f32.mxu0 0.0
    %373 = vmatmul.mubr.f32.gmra.mrb[0].mxu0 %v253
    %v374 = vpop.f32.mrb[0].mxu0
    %v375 = vadd.f32 %v286, %v374
    %v376 = vpop.f32.mrb[0].mxu0
    %377 = vmatprep.mubr.f32.mxu0 0.0
    %378 = vmatmul.mubr.f32.gmra.mrb[0].mxu0 %v254
    %v379 = vpop.f32.mrb[0].mxu0
    %v380 = vadd.f32 %v286, %v379
    %v381 = vpop.f32.mrb[0].mxu0
    %382 = vmatprep.mubr.f32.mxu0 0.0
    %383 = vmatmul.mubr.f32.gmra.mrb[0].mxu0 %v255
    %v384 = vpop.f32.mrb[0].mxu0
    %v385 = vadd.f32 %v286, %v384
    %v386 = vpop.f32.mrb[0].mxu0
    %387 = vmatprep.mubr.f32.mxu0 0.0
    %388 = vmatmul.mubr.f32.gmra.mrb[0].mxu0 %v256
    %v389 = vpop.f32.mrb[0].mxu0
    %v390 = vadd.f32 %v286, %v389
    %v391 = vpop.f32.mrb[0].mxu0
    %392 = vmatprep.mubr.f32.mxu0 0.0
    %393 = vmatmul.mubr.f32.gmra.mrb[0].mxu0 %v257
    %v394 = vpop.f32.mrb[0].mxu0
    %v395 = vadd.f32 %v286, %v394
    %v396 = vpop.f32.mrb[0].mxu0
    %397 = vmatprep.mubr.f32.mxu0 0.0
    %398 = vmatmul.mubr.f32.gmra.mrb[0].mxu0 %v258
    %v399 = vpop.f32.mrb[0].mxu0
    %v400 = vadd.f32 %v286, %v399
    %v401 = vpop.f32.mrb[0].mxu0
    %402 = vmatprep.mubr.f32.mxu0 0.0
    %403 = vmatmul.mubr.f32.gmra.mrb[0].mxu0 %v259
    %v404 = vpop.f32.mrb[0].mxu0
    %v405 = vadd.f32 %v286, %v404
    %v406 = vpop.f32.mrb[0].mxu0
    %407 = vmatprep.mubr.f32.mxu0 0.0
    %408 = vmatmul.mubr.f32.gmra.mrb[0].mxu0 %v260
    %v409 = vpop.f32.mrb[0].mxu0
    %v410 = vadd.f32 %v286, %v409
    %v411 = vpop.f32.mrb[0].mxu0
    %412 = vmatprep.mubr.f32.mxu0 0.0
    %413 = vmatmul.mubr.f32.gmra.mrb[0].mxu0 %v261
    %v414 = vpop.f32.mrb[0].mxu0
    %v415 = vadd.f32 %v286, %v414
    %v416 = vpop.f32.mrb[0].mxu0
    %417 = vmatprep.mubr.f32.mxu0 0.0
    %418 = vmatmul.mubr.f32.gmra.mrb[0].mxu0 %v262
    %v419 = vpop.f32.mrb[0].mxu0
    %v420 = vadd.f32 %v286, %v419
    %v421 = vpop.f32.mrb[0].mxu0
    %422 = vmatprep.mubr.f32.mxu0 0.0
    %423 = vmatmul.mubr.f32.gmra.mrb[0].mxu0 %v263
    %v424 = vpop.f32.mrb[0].mxu0
    %v425 = vadd.f32 %v286, %v424
    %v426 = vpop.f32.mrb[0].mxu0
    %427 = vmatprep.mubr.f32.mxu0 0.0
    %428 = vmatmul.mubr.f32.gmra.mrb[0].mxu0 %v264
    %v429 = vpop.f32.mrb[0].mxu0
    %v430 = vadd.f32 %v286, %v429
    %v431 = vpop.f32.mrb[0].mxu0
    %432 = vdwg.mxu0
    %v433 = vmax.f32 %v355, 0.0
    %v434 = vmax.f32 %v360, 0.0
    %v435 = vmax.f32 %v365, 0.0
    %v436 = vmax.f32 %v370, 0.0
    %v437 = vmax.f32 %v375, 0.0
    %v438 = vmax.f32 %v380, 0.0
    %v439 = vmax.f32 %v385, 0.0
    %v440 = vmax.f32 %v390, 0.0
    %v441 = vmax.f32 %v395, 0.0
    %v442 = vmax.f32 %v400, 0.0
    %v443 = vmax.f32 %v405, 0.0
    %v444 = vmax.f32 %v410, 0.0
    %v445 = vmax.f32 %v415, 0.0
    %v446 = vmax.f32 %v420, 0.0
    %v447 = vmax.f32 %v425, 0.0
    %v448 = vmax.f32 %v430, 0.0
    %v449 = vld [vmem:[%s5] sm:$0xff]
    %450 = vmatprep.subr.mxu0 0.0
    %451 = vmatpush1.xpose.msra.mxu0 %v433
    %452 = vmatprep.subr.mxu0 0.0
    %453 = vmatpush1.xpose.msra.mxu0 %v434
    %454 = vmatprep.subr.mxu0 0.0
    %455 = vmatpush1.xpose.msra.mxu0 %v435
    %456 = vmatprep.subr.mxu0 0.0
    %457 = vmatpush1.xpose.msra.mxu0 %v436
    %458 = vmatprep.subr.mxu0 0.0
    %459 = vmatpush1.xpose.msra.mxu0 %v437
    %460 = vmatprep.subr.mxu0 0.0
    %461 = vmatpush1.xpose.msra.mxu0 %v438
    %462 = vmatprep.subr.mxu0 0.0
    %463 = vmatpush1.xpose.msra.mxu0 %v439
    %464 = vmatprep.subr.mxu0 0.0
    %465 = vmatpush1.xpose.msra.mxu0 %v440
    %466 = vmatprep.subr.mxu0 0.0
    %467 = vmatpush1.xpose.msra.mxu0 %v441
    %468 = vmatprep.subr.mxu0 0.0
    %469 = vmatpush1.xpose.msra.mxu0 %v442
    %470 = vmatprep.subr.mxu0 0.0
    %471 = vmatpush1.xpose.msra.mxu0 %v443
    %472 = vmatprep.subr.mxu0 0.0
    %473 = vmatpush1.xpose.msra.mxu0 %v444
    %474 = vmatprep.subr.mxu0 0.0
    %475 = vmatpush1.xpose.msra.mxu0 %v445
    %476 = vmatprep.subr.mxu0 0.0
    %477 = vmatpush1.xpose.msra.mxu0 %v446
    %478 = vmatprep.subr.mxu0 0.0
    %479 = vmatpush1.xpose.msra.mxu0 %v447
    %480 = vmatprep.subr.mxu0 0.0
    %481 = vmatpush1.xpose.msra.mxu0 %v448
    %482 = vmatprep.subr.mxu0 0.0
    %483 = vmatpush1.xpose.msra.mxu0 0.0
    %484 = vmatprep.subr.mxu0 0.0
    %485 = vmatpush1.xpose.msra.mxu0 0.0
    %486 = vmatprep.subr.mxu0 0.0
    %487 = vmatpush1.xpose.msra.mxu0 0.0
    %488 = vmatprep.subr.mxu0 0.0
    %489 = vmatpush1.xpose.msra.mxu0 0.0
    %490 = vmatprep.subr.mxu0 0.0
    %491 = vmatpush1.xpose.msra.mxu0 0.0
    %492 = vmatprep.subr.mxu0 0.0
    %493 = vmatpush1.xpose.msra.mxu0 0.0
    %494 = vmatprep.subr.mxu0 0.0
    %495 = vmatpush1.xpose.msra.mxu0 0.0
    %496 = vmatprep.subr.mxu0 0.0
    %497 = vmatpush1.xpose.msra.mxu0 0.0
    %498 = vmatprep.subr.mxu0 0.0
    %499 = vmatpush1.xpose.msra.mxu0 0.0
    %500 = vmatprep.subr.mxu0 0.0
    %501 = vmatpush1.xpose.msra.mxu0 0.0
    %502 = vmatprep.subr.mxu0 0.0
    %503 = vmatpush1.xpose.msra.mxu0 0.0
    %504 = vmatprep.subr.mxu0 0.0
    %505 = vmatpush1.xpose.msra.mxu0 0.0
    %506 = vmatprep.subr.mxu0 0.0
    %507 = vmatpush1.xpose.msra.mxu0 0.0
    %508 = vmatprep.subr.mxu0 0.0
    %509 = vmatpush1.xpose.msra.mxu0 0.0
    %510 = vmatprep.subr.mxu0 0.0
    %511 = vmatpush1.xpose.msra.mxu0 0.0
    %512 = vmatprep.subr.mxu0 0.0
    %513 = vmatpush1.xpose.msra.mxu0 0.0
    %514 = vmatprep.mubr.f32.mxu0 0.0
    %515 = vmatmul.mubr.f32.gmra.mrb[0].mxu0 %v449
    %v516 = vpop.f32.mrb[0].mxu0
    %v517 = vadd.f32 0.0, %v516
    %v518 = vpop.f32.mrb[0].mxu0
    %519 = vdwg.mxu0
    %s520 = sld [smem:[#allocation2]]
    %v521 = vstv %s520
    %v522 = vadd.f32 %v517, %v521
    %v523 = vmul.f32 %v522, 0.5
    %v524 = vtanh.pop %v523
    %v525 = vadd.f32 %v524, 1.0
    %v526 = vmul.f32 %v525, 0.5
    %527 = vst [vmem:[#allocation3] sm:$0x1] %v526
    // Predicated region
    $region30: #{tpu_custom_call.1} parent=1 // pred_check
      _
    $region31: #{tpu_custom_call.1} parent=1 // pred_check_branch
      %529 = sbr.rel (0) target = $region33
    $region32: #{tpu_custom_call.1} parent=1 // pred_region
      %s531 = ssub.s32 16, 16
      %532 = vsyncadd [#allocation4], %s531
      %s534 = sshll.u32 [#allocation3], 4
      %s535 = int_to_ptr.vmem [resolvable:$true] %s534
      %537 = dma.vmem_to_hbm [thread:$0]  %s535, 16, %s7, [#allocation4]
    $region33: #{tpu_custom_call.1} parent=1 // pred_fallthru
      _
    // Predicated region
    $region34: #{tpu_custom_call.1} parent=1 // pred_check
      _
    $region35: #{tpu_custom_call.1} parent=1 // pred_check_branch
      %539 = sbr.rel (0) target = $region37
    $region36: #{tpu_custom_call.1} parent=1 // pred_region
      %540 = dma.done [#allocation4], 16
    $region37: #{tpu_custom_call.1} parent=1 // pred_fallthru
      _
    %541 = vsyncpa [#allocation4], 1

</llo_original>
